<compile_context>
chip_gen: v7x
topology: tpu7x:2x2x1
jax: 0.10.0
libtpu: 0.0.40
codegen_flags: <defaults>
</compile_context>

<pallas_src>
import jax
import jax.numpy as jnp
from jax import lax
from jax.experimental import pallas as pl
from jax.experimental.pallas import tpu as pltpu

K = 5       # conv kernel size
PAD = 2     # 'same' padding
EPS = 1e-5  # BatchNorm1d default eps


def double_conv_kernel(x_ref, w1_ref, b1_ref, w2_ref, b2_ref, o_ref):
    """One batch-block per grid step.

    x_ref  : (Bb, Cin, T)      input (channels on sublanes, time on lanes)
    w1_ref : (K, Cmid, Cin)    conv1 weights (BN folded), tap-major
    b1_ref : (Cmid, 1)         conv1 bias   (BN folded)
    w2_ref : (K, Cout, Cmid)   conv2 weights (BN folded), tap-major
    b2_ref : (Cout, 1)         conv2 bias   (BN folded)
    o_ref  : (Bb, Cout, T)
    """
    Bb, Cin, T = x_ref.shape
    N = Bb * T

    # --- Fuse the Bb samples along lanes: (Cin, Bb*T). ---------------------
    # T is a multiple of 128, so this is whole-lane-tile copies (no cross-lane
    # relayout); downstream each layer is ONE set of K wide matmuls.
    if Bb == 1:
        x_wide = x_ref[0]
    else:
        x_wide = jnp.concatenate([x_ref[b] for b in range(Bb)], axis=-1)

    # --- Periodic boundary masks, hoisted (built once per grid step). ------
    # Column t of the fused slab belongs to sample t//T at within-sample index
    # tt = t % T; tap shift s reads within-sample index tt - s, which must lie
    # in [0, T) (zero padding of the conv / no cross-sample bleed from roll).
    tt = lax.broadcasted_iota(jnp.int32, (1, N), 1) % T
    mask_f = {}
    for k in range(K):
        s = PAD - k
        if s != 0:
            mask_f[s] = ((tt >= s) & (tt < T + s)).astype(jnp.float32)

    def conv_bn_relu(v, w_ref, b_ref):
        # v: (Ci, N); w_ref: (K, Co, Ci); b_ref: (Co, 1)
        co = w_ref.shape[1]
        # Bias folded into the accumulator init: no separate broadcast+add.
        acc = jnp.broadcast_to(b_ref[...], (co, N))
        for k in range(K):
            s = PAD - k
            if s == 0:
                tap = v
            else:
                # Lane roll on the XLU (idle slot) + one VPU mul for the mask.
                tap = pltpu.roll(v, shift=s % N, axis=1) * mask_f[s]
            acc = acc + jnp.dot(w_ref[k], tap,
                                preferred_element_type=jnp.float32)
        return jnp.maximum(acc, 0.0)

    y1 = conv_bn_relu(x_wide, w1_ref, b1_ref)   # (Cmid, N)
    y2 = conv_bn_relu(y1, w2_ref, b2_ref)       # (Cout, N)

    # Split the wide result back per sample: static, 128-aligned lane slices
    # -> unmasked full-vreg stores.
    for b in range(Bb):
        o_ref[b] = y2[:, b * T:(b + 1) * T].astype(o_ref.dtype)


def _pick_batch_block(B, cin, cmid, cout, T, vmem_budget_bytes=32 << 20):
    """Largest batch block whose estimated VMEM footprint fits the budget.

    Estimate covers the double-buffered pipelined input/output tiles plus the
    in-kernel fused slabs (x_wide, masks, y1/y2, accumulator, rolled temp).
    v5e/v6e: grid=1 is fine (single TensorCore; fewer, fatter steps win).
    v7x: 64 MiB VMEM / 2 TCs -> keep >=2 parallel steps only when each block
    stays big enough (>= ~2 MiB) to be worth splitting across cores.
    """
    def est_bytes(bb):
        n = bb * T
        io = 2 * 4 * (bb * cin * T + bb * cout * T)                # in/out, double-buffered
        slabs = 4 * n * (cin + 2 * cmid + 2 * cout + max(cin, cmid) + K)
        return io + slabs

    divisors = [d for d in range(B, 0, -1) if B % d == 0]
    fitting = [d for d in divisors if est_bytes(d) <= vmem_budget_bytes]
    if not fitting:
        return 1
    best = fitting[0]                      # largest block that fits (v5e/v6e)
    for d in fitting:                      # v7x: keep 2 TCs busy if worthwhile
        if B // d >= 2 and est_bytes(d) >= (2 << 20):
            return d
    return best


def fold_bn(w, b, gamma, beta, mean, var):
    """Fold eval-mode BatchNorm1d into the preceding Conv1d and pack weights.

    w: (Cout, Cin, K) PyTorch layout, b: (Cout,)
    Returns weights packed tap-major as (K, Cout, Cin) — so the kernel indexes
    each tap on the leading axis (no lane slicing) — and bias (Cout, 1).
    """
    s = gamma / jnp.sqrt(var + EPS)                 # (Cout,)
    w_f = w * s[:, None, None]                      # scale per out-channel
    b_f = (b - mean) * s + beta                     # (Cout,)
    w_p = jnp.transpose(w_f, (2, 0, 1))             # (K, Cout, Cin)
    return w_p.astype(jnp.float32), b_f[:, None].astype(jnp.float32)


def double_conv_forward(x_nct, w1p, b1p, w2p, b2p, *, batch_block=None):
    """x_nct: (B, Cin, T) float32 (PyTorch NCT layout).  Returns (B, Cout, T)."""
    B, Cin, T = x_nct.shape
    _, Cmid, _ = w1p.shape
    _, Cout, _ = w2p.shape
    if batch_block is None:
        batch_block = _pick_batch_block(B, Cin, Cmid, Cout, T)
    assert B % batch_block == 0

    return pl.pallas_call(
        double_conv_kernel,
        out_shape=jax.ShapeDtypeStruct((B, Cout, T), jnp.float32),
        grid_spec=pltpu.PrefetchScalarGridSpec(
            num_scalar_prefetch=0,
            grid=(B // batch_block,),
            in_specs=[
                pl.BlockSpec((batch_block, Cin, T), lambda b: (b, 0, 0)),
                pl.BlockSpec((K, Cmid, Cin), lambda b: (0, 0, 0)),
                pl.BlockSpec((Cmid, 1), lambda b: (0, 0)),
                pl.BlockSpec((K, Cout, Cmid), lambda b: (0, 0, 0)),
                pl.BlockSpec((Cout, 1), lambda b: (0, 0)),
            ],
            out_specs=pl.BlockSpec((batch_block, Cout, T), lambda b: (b, 0, 0)),
        ),
        compiler_params=pltpu.CompilerParams(
            dimension_semantics=("parallel",),
            # 48 MiB: headroom over the 32 MiB block-sizing budget.  On v6e
            # (128 MiB physical) this can be raised toward ~96 MiB for bigger
            # blocks; on v7x (64 MiB/TC) keep the per-step footprint <~40 MiB.
            vmem_limit_bytes=48 * 1024 * 1024,
        ),
    )(x_nct, w1p, b1p, w2p, b2p)


def ref_forward(x_nct, raw):
    """Pure-JAX reference of the PyTorch module (eval-mode BN)."""
    def conv_bn_relu(x, w, b, g, be, m, v):
        y = lax.conv_general_dilated(
            x, w, window_strides=(1,), padding=[(PAD, PAD)],
            dimension_numbers=("NCH", "OIH", "NCH"))
        y = y + b[None, :, None]
        y = (y - m[None, :, None]) / jnp.sqrt(v[None, :, None] + EPS)
        y = y * g[None, :, None] + be[None, :, None]
        return jnp.maximum(y, 0.0)

    (w1, b1, g1, be1, m1, v1, w2, b2, g2, be2, m2, v2) = raw
    y = conv_bn_relu(x_nct, w1, b1, g1, be1, m1, v1)
    y = conv_bn_relu(y, w2, b2, g2, be2, m2, v2)
    return y


def init_raw_params(key, in_ch, out_ch):
    ks = jax.random.split(key, 12)
    w1 = 0.1 * jax.random.normal(ks[0], (out_ch, in_ch, K), jnp.float32)
    b1 = 0.1 * jax.random.normal(ks[1], (out_ch,), jnp.float32)
    g1 = 1.0 + 0.1 * jax.random.normal(ks[2], (out_ch,), jnp.float32)
    be1 = 0.1 * jax.random.normal(ks[3], (out_ch,), jnp.float32)
    m1 = 0.1 * jax.random.normal(ks[4], (out_ch,), jnp.float32)
    v1 = jnp.abs(1.0 + 0.1 * jax.random.normal(ks[5], (out_ch,), jnp.float32))
    w2 = 0.1 * jax.random.normal(ks[6], (out_ch, out_ch, K), jnp.float32)
    b2 = 0.1 * jax.random.normal(ks[7], (out_ch,), jnp.float32)
    g2 = 1.0 + 0.1 * jax.random.normal(ks[8], (out_ch,), jnp.float32)
    be2 = 0.1 * jax.random.normal(ks[9], (out_ch,), jnp.float32)
    m2 = 0.1 * jax.random.normal(ks[10], (out_ch,), jnp.float32)
    v2 = jnp.abs(1.0 + 0.1 * jax.random.normal(ks[11], (out_ch,), jnp.float32))
    return (w1, b1, g1, be1, m1, v1, w2, b2, g2, be2, m2, v2)


if __name__ == "__main__":
    # T is a multiple of 128 so the in-kernel batch fusion / stores stay
    # lane-dense.
    B, in_ch, out_ch, T = 2, 4, 8, 128

    key = jax.random.PRNGKey(0)
    kx, kp = jax.random.split(key)
    x = jax.random.normal(kx, (B, in_ch, T), jnp.float32)   # NCT, like PyTorch

    raw = init_raw_params(kp, in_ch, out_ch)
    (w1, b1, g1, be1, m1, v1, w2, b2, g2, be2, m2, v2) = raw
    w1p, b1p = fold_bn(w1, b1, g1, be1, m1, v1)
    w2p, b2p = fold_bn(w2, b2, g2, be2, m2, v2)

    out = double_conv_forward(x, w1p, b1p, w2p, b2p)
    jax.block_until_ready(out)

    ref = ref_forward(x, raw)
    assert out.shape == (B, out_ch, T)
    err = float(jnp.max(jnp.abs(out - ref)))
    assert jnp.allclose(out, ref, atol=1e-4, rtol=1e-4), err

    print("KERNEL_OK")
</pallas_src>

<mosaic_0001>
module attributes {stable_mosaic.version = 11 : i64} {
  func.func @double_conv_kernel(%arg0: i32, %arg1: memref<2x4x128xf32, #tpu.memory_space<vmem>>, %arg2: memref<5x8x4xf32, #tpu.memory_space<vmem>>, %arg3: memref<8x1xf32, #tpu.memory_space<vmem>>, %arg4: memref<5x8x8xf32, #tpu.memory_space<vmem>>, %arg5: memref<8x1xf32, #tpu.memory_space<vmem>>, %arg6: memref<2x8x128xf32, #tpu.memory_space<vmem>>) attributes {dimension_semantics = [#tpu.dimension_semantics<parallel>], iteration_bounds = array<i64: 1>, scalar_prefetch = 0 : i64, scratch_operands = 0 : i64, tpu.core_type = #tpu.core_type<tc>, window_params = [{transform_indices = @transform_0, window_bounds = array<i64: 2, 4, 128>}, {pipeline_mode = #tpu.pipeline_mode<synchronous>, transform_indices = @transform_1, window_bounds = array<i64: 5, 8, 4>}, {pipeline_mode = #tpu.pipeline_mode<synchronous>, transform_indices = @transform_2, window_bounds = array<i64: 8, 1>}, {pipeline_mode = #tpu.pipeline_mode<synchronous>, transform_indices = @transform_3, window_bounds = array<i64: 5, 8, 8>}, {pipeline_mode = #tpu.pipeline_mode<synchronous>, transform_indices = @transform_4, window_bounds = array<i64: 8, 1>}, {transform_indices = @transform_5, window_bounds = array<i64: 2, 8, 128>}]} {
    %c0 = arith.constant 0 : index
    %c0_0 = arith.constant 0 : index
    %c0_1 = arith.constant 0 : index
    %0 = vector.load %arg1[%c0, %c0_0, %c0_1] : memref<2x4x128xf32, #tpu.memory_space<vmem>>, vector<1x4x128xf32>
    %1 = vector.shape_cast %0 : vector<1x4x128xf32> to vector<4x128xf32>
    %c1 = arith.constant 1 : index
    %c0_2 = arith.constant 0 : index
    %c0_3 = arith.constant 0 : index
    %2 = vector.load %arg1[%c1, %c0_2, %c0_3] : memref<2x4x128xf32, #tpu.memory_space<vmem>>, vector<1x4x128xf32>
    %3 = vector.shape_cast %2 : vector<1x4x128xf32> to vector<4x128xf32>
    %4 = tpu.concatenate %1, %3 in 1 : vector<4x128xf32>, vector<4x128xf32> -> vector<4x256xf32>
    %5 = tpu.iota {dimensions = array<i32: 1>} : vector<1x256xi32>
    %c128_i32 = arith.constant 128 : i32
    %c0_i32 = arith.constant 0 : i32
    %6 = arith.cmpi eq, %c128_i32, %c0_i32 : i32
    %c1_i32 = arith.constant 1 : i32
    %7 = arith.select %6, %c1_i32, %c128_i32 : i32
    %8 = vector.broadcast %7 : i32 to vector<1x256xi32>
    %9 = arith.remsi %5, %8 : vector<1x256xi32>
    %c0_i32_4 = arith.constant 0 : i32
    %10 = vector.broadcast %c0_i32_4 : i32 to vector<1x256xi32>
    %11 = arith.cmpi ne, %9, %10 : vector<1x256xi32>
    %c0_i32_5 = arith.constant 0 : i32
    %12 = vector.broadcast %c0_i32_5 : i32 to vector<1x256xi32>
    %13 = arith.cmpi slt, %9, %12 : vector<1x256xi32>
    %c0_i32_6 = arith.constant 0 : i32
    %14 = arith.cmpi slt, %7, %c0_i32_6 : i32
    %15 = vector.broadcast %14 : i1 to vector<1x256xi1>
    %16 = vector.broadcast %15 : vector<1x256xi1> to vector<1x256xi1>
    %17 = arith.xori %13, %16 : vector<1x256xi1>
    %18 = arith.andi %17, %11 : vector<1x256xi1>
    %19 = vector.broadcast %7 : i32 to vector<1x256xi32>
    %20 = arith.addi %9, %19 : vector<1x256xi32>
    %21 = arith.select %18, %20, %9 : vector<1x256xi1>, vector<1x256xi32>
    %c2_i32 = arith.constant 2 : i32
    %22 = vector.broadcast %c2_i32 : i32 to vector<1x256xi32>
    %23 = arith.cmpi sge, %21, %22 : vector<1x256xi32>
    %c130_i32 = arith.constant 130 : i32
    %24 = vector.broadcast %c130_i32 : i32 to vector<1x256xi32>
    %25 = arith.cmpi slt, %21, %24 : vector<1x256xi32>
    %26 = arith.andi %23, %25 : vector<1x256xi1>
    %27 = arith.extui %26 : vector<1x256xi1> to vector<1x256xi32>
    %28 = arith.sitofp %27 : vector<1x256xi32> to vector<1x256xf32>
    %c1_i32_7 = arith.constant 1 : i32
    %29 = vector.broadcast %c1_i32_7 : i32 to vector<1x256xi32>
    %30 = arith.cmpi sge, %21, %29 : vector<1x256xi32>
    %c129_i32 = arith.constant 129 : i32
    %31 = vector.broadcast %c129_i32 : i32 to vector<1x256xi32>
    %32 = arith.cmpi slt, %21, %31 : vector<1x256xi32>
    %33 = arith.andi %30, %32 : vector<1x256xi1>
    %34 = arith.extui %33 : vector<1x256xi1> to vector<1x256xi32>
    %35 = arith.sitofp %34 : vector<1x256xi32> to vector<1x256xf32>
    %c-1_i32 = arith.constant -1 : i32
    %36 = vector.broadcast %c-1_i32 : i32 to vector<1x256xi32>
    %37 = arith.cmpi sge, %21, %36 : vector<1x256xi32>
    %c127_i32 = arith.constant 127 : i32
    %38 = vector.broadcast %c127_i32 : i32 to vector<1x256xi32>
    %39 = arith.cmpi slt, %21, %38 : vector<1x256xi32>
    %40 = arith.andi %37, %39 : vector<1x256xi1>
    %41 = arith.extui %40 : vector<1x256xi1> to vector<1x256xi32>
    %42 = arith.sitofp %41 : vector<1x256xi32> to vector<1x256xf32>
    %c-2_i32 = arith.constant -2 : i32
    %43 = vector.broadcast %c-2_i32 : i32 to vector<1x256xi32>
    %44 = arith.cmpi sge, %21, %43 : vector<1x256xi32>
    %c126_i32 = arith.constant 126 : i32
    %45 = vector.broadcast %c126_i32 : i32 to vector<1x256xi32>
    %46 = arith.cmpi slt, %21, %45 : vector<1x256xi32>
    %47 = arith.andi %44, %46 : vector<1x256xi1>
    %48 = arith.extui %47 : vector<1x256xi1> to vector<1x256xi32>
    %49 = arith.sitofp %48 : vector<1x256xi32> to vector<1x256xf32>
    %c0_8 = arith.constant 0 : index
    %c0_9 = arith.constant 0 : index
    %50 = vector.load %arg3[%c0_8, %c0_9] : memref<8x1xf32, #tpu.memory_space<vmem>>, vector<8x1xf32>
    %51 = vector.shape_cast %50 : vector<8x1xf32> to vector<8x1xf32>
    %52 = vector.broadcast %51 : vector<8x1xf32> to vector<8x256xf32>
    %c2_i32_10 = arith.constant 2 : i32
    %53 = tpu.dynamic_rotate %4 by %c2_i32_10 dim 1 : vector<4x256xf32>, i32 -> vector<4x256xf32>
    %54 = vector.broadcast %28 : vector<1x256xf32> to vector<4x256xf32>
    %55 = arith.mulf %53, %54 : vector<4x256xf32>
    %c0_11 = arith.constant 0 : index
    %c0_12 = arith.constant 0 : index
    %c0_13 = arith.constant 0 : index
    %56 = vector.load %arg2[%c0_11, %c0_12, %c0_13] : memref<5x8x4xf32, #tpu.memory_space<vmem>>, vector<1x8x4xf32>
    %57 = vector.shape_cast %56 : vector<1x8x4xf32> to vector<8x4xf32>
    %cst = arith.constant dense<0.000000e+00> : vector<8x256xf32>
    %58 = tpu.matmul %57, %55, %cst {dimension_numbers = #tpu.dot_dimension_numbers<[1], [0], [0], [1], [0, 0, 1, 1], [], []>} : vector<8x4xf32>, vector<4x256xf32>, vector<8x256xf32> -> vector<8x256xf32>
    %59 = arith.addf %52, %58 : vector<8x256xf32>
    %c1_i32_14 = arith.constant 1 : i32
    %60 = tpu.dynamic_rotate %4 by %c1_i32_14 dim 1 : vector<4x256xf32>, i32 -> vector<4x256xf32>
    %61 = vector.broadcast %35 : vector<1x256xf32> to vector<4x256xf32>
    %62 = arith.mulf %60, %61 : vector<4x256xf32>
    %c1_15 = arith.constant 1 : index
    %c0_16 = arith.constant 0 : index
    %c0_17 = arith.constant 0 : index
    %63 = vector.load %arg2[%c1_15, %c0_16, %c0_17] : memref<5x8x4xf32, #tpu.memory_space<vmem>>, vector<1x8x4xf32>
    %64 = vector.shape_cast %63 : vector<1x8x4xf32> to vector<8x4xf32>
    %cst_18 = arith.constant dense<0.000000e+00> : vector<8x256xf32>
    %65 = tpu.matmul %64, %62, %cst_18 {dimension_numbers = #tpu.dot_dimension_numbers<[1], [0], [0], [1], [0, 0, 1, 1], [], []>} : vector<8x4xf32>, vector<4x256xf32>, vector<8x256xf32> -> vector<8x256xf32>
    %66 = arith.addf %59, %65 : vector<8x256xf32>
    %c2 = arith.constant 2 : index
    %c0_19 = arith.constant 0 : index
    %c0_20 = arith.constant 0 : index
    %67 = vector.load %arg2[%c2, %c0_19, %c0_20] : memref<5x8x4xf32, #tpu.memory_space<vmem>>, vector<1x8x4xf32>
    %68 = vector.shape_cast %67 : vector<1x8x4xf32> to vector<8x4xf32>
    %cst_21 = arith.constant dense<0.000000e+00> : vector<8x256xf32>
    %69 = tpu.matmul %68, %4, %cst_21 {dimension_numbers = #tpu.dot_dimension_numbers<[1], [0], [0], [1], [0, 0, 1, 1], [], []>} : vector<8x4xf32>, vector<4x256xf32>, vector<8x256xf32> -> vector<8x256xf32>
    %70 = arith.addf %66, %69 : vector<8x256xf32>
    %c255_i32 = arith.constant 255 : i32
    %71 = tpu.dynamic_rotate %4 by %c255_i32 dim 1 : vector<4x256xf32>, i32 -> vector<4x256xf32>
    %72 = vector.broadcast %42 : vector<1x256xf32> to vector<4x256xf32>
    %73 = arith.mulf %71, %72 : vector<4x256xf32>
    %c3 = arith.constant 3 : index
    %c0_22 = arith.constant 0 : index
    %c0_23 = arith.constant 0 : index
    %74 = vector.load %arg2[%c3, %c0_22, %c0_23] : memref<5x8x4xf32, #tpu.memory_space<vmem>>, vector<1x8x4xf32>
    %75 = vector.shape_cast %74 : vector<1x8x4xf32> to vector<8x4xf32>
    %cst_24 = arith.constant dense<0.000000e+00> : vector<8x256xf32>
    %76 = tpu.matmul %75, %73, %cst_24 {dimension_numbers = #tpu.dot_dimension_numbers<[1], [0], [0], [1], [0, 0, 1, 1], [], []>} : vector<8x4xf32>, vector<4x256xf32>, vector<8x256xf32> -> vector<8x256xf32>
    %77 = arith.addf %70, %76 : vector<8x256xf32>
    %c254_i32 = arith.constant 254 : i32
    %78 = tpu.dynamic_rotate %4 by %c254_i32 dim 1 : vector<4x256xf32>, i32 -> vector<4x256xf32>
    %79 = vector.broadcast %49 : vector<1x256xf32> to vector<4x256xf32>
    %80 = arith.mulf %78, %79 : vector<4x256xf32>
    %c4 = arith.constant 4 : index
    %c0_25 = arith.constant 0 : index
    %c0_26 = arith.constant 0 : index
    %81 = vector.load %arg2[%c4, %c0_25, %c0_26] : memref<5x8x4xf32, #tpu.memory_space<vmem>>, vector<1x8x4xf32>
    %82 = vector.shape_cast %81 : vector<1x8x4xf32> to vector<8x4xf32>
    %cst_27 = arith.constant dense<0.000000e+00> : vector<8x256xf32>
    %83 = tpu.matmul %82, %80, %cst_27 {dimension_numbers = #tpu.dot_dimension_numbers<[1], [0], [0], [1], [0, 0, 1, 1], [], []>} : vector<8x4xf32>, vector<4x256xf32>, vector<8x256xf32> -> vector<8x256xf32>
    %84 = arith.addf %77, %83 : vector<8x256xf32>
    %cst_28 = arith.constant 0.000000e+00 : f32
    %85 = vector.broadcast %cst_28 : f32 to vector<8x256xf32>
    %86 = arith.maximumf %84, %85 : vector<8x256xf32>
    %c0_29 = arith.constant 0 : index
    %c0_30 = arith.constant 0 : index
    %87 = vector.load %arg5[%c0_29, %c0_30] : memref<8x1xf32, #tpu.memory_space<vmem>>, vector<8x1xf32>
    %88 = vector.shape_cast %87 : vector<8x1xf32> to vector<8x1xf32>
    %89 = vector.broadcast %88 : vector<8x1xf32> to vector<8x256xf32>
    %c2_i32_31 = arith.constant 2 : i32
    %90 = tpu.dynamic_rotate %86 by %c2_i32_31 dim 1 : vector<8x256xf32>, i32 -> vector<8x256xf32>
    %91 = vector.broadcast %28 : vector<1x256xf32> to vector<8x256xf32>
    %92 = arith.mulf %90, %91 : vector<8x256xf32>
    %c0_32 = arith.constant 0 : index
    %c0_33 = arith.constant 0 : index
    %c0_34 = arith.constant 0 : index
    %93 = vector.load %arg4[%c0_32, %c0_33, %c0_34] : memref<5x8x8xf32, #tpu.memory_space<vmem>>, vector<1x8x8xf32>
    %94 = vector.shape_cast %93 : vector<1x8x8xf32> to vector<8x8xf32>
    %cst_35 = arith.constant dense<0.000000e+00> : vector<8x256xf32>
    %95 = tpu.matmul %94, %92, %cst_35 {dimension_numbers = #tpu.dot_dimension_numbers<[1], [0], [0], [1], [0, 0, 1, 1], [], []>} : vector<8x8xf32>, vector<8x256xf32>, vector<8x256xf32> -> vector<8x256xf32>
    %96 = arith.addf %89, %95 : vector<8x256xf32>
    %c1_i32_36 = arith.constant 1 : i32
    %97 = tpu.dynamic_rotate %86 by %c1_i32_36 dim 1 : vector<8x256xf32>, i32 -> vector<8x256xf32>
    %98 = vector.broadcast %35 : vector<1x256xf32> to vector<8x256xf32>
    %99 = arith.mulf %97, %98 : vector<8x256xf32>
    %c1_37 = arith.constant 1 : index
    %c0_38 = arith.constant 0 : index
    %c0_39 = arith.constant 0 : index
    %100 = vector.load %arg4[%c1_37, %c0_38, %c0_39] : memref<5x8x8xf32, #tpu.memory_space<vmem>>, vector<1x8x8xf32>
    %101 = vector.shape_cast %100 : vector<1x8x8xf32> to vector<8x8xf32>
    %cst_40 = arith.constant dense<0.000000e+00> : vector<8x256xf32>
    %102 = tpu.matmul %101, %99, %cst_40 {dimension_numbers = #tpu.dot_dimension_numbers<[1], [0], [0], [1], [0, 0, 1, 1], [], []>} : vector<8x8xf32>, vector<8x256xf32>, vector<8x256xf32> -> vector<8x256xf32>
    %103 = arith.addf %96, %102 : vector<8x256xf32>
    %c2_41 = arith.constant 2 : index
    %c0_42 = arith.constant 0 : index
    %c0_43 = arith.constant 0 : index
    %104 = vector.load %arg4[%c2_41, %c0_42, %c0_43] : memref<5x8x8xf32, #tpu.memory_space<vmem>>, vector<1x8x8xf32>
    %105 = vector.shape_cast %104 : vector<1x8x8xf32> to vector<8x8xf32>
    %cst_44 = arith.constant dense<0.000000e+00> : vector<8x256xf32>
    %106 = tpu.matmul %105, %86, %cst_44 {dimension_numbers = #tpu.dot_dimension_numbers<[1], [0], [0], [1], [0, 0, 1, 1], [], []>} : vector<8x8xf32>, vector<8x256xf32>, vector<8x256xf32> -> vector<8x256xf32>
    %107 = arith.addf %103, %106 : vector<8x256xf32>
    %c255_i32_45 = arith.constant 255 : i32
    %108 = tpu.dynamic_rotate %86 by %c255_i32_45 dim 1 : vector<8x256xf32>, i32 -> vector<8x256xf32>
    %109 = vector.broadcast %42 : vector<1x256xf32> to vector<8x256xf32>
    %110 = arith.mulf %108, %109 : vector<8x256xf32>
    %c3_46 = arith.constant 3 : index
    %c0_47 = arith.constant 0 : index
    %c0_48 = arith.constant 0 : index
    %111 = vector.load %arg4[%c3_46, %c0_47, %c0_48] : memref<5x8x8xf32, #tpu.memory_space<vmem>>, vector<1x8x8xf32>
    %112 = vector.shape_cast %111 : vector<1x8x8xf32> to vector<8x8xf32>
    %cst_49 = arith.constant dense<0.000000e+00> : vector<8x256xf32>
    %113 = tpu.matmul %112, %110, %cst_49 {dimension_numbers = #tpu.dot_dimension_numbers<[1], [0], [0], [1], [0, 0, 1, 1], [], []>} : vector<8x8xf32>, vector<8x256xf32>, vector<8x256xf32> -> vector<8x256xf32>
    %114 = arith.addf %107, %113 : vector<8x256xf32>
    %c254_i32_50 = arith.constant 254 : i32
    %115 = tpu.dynamic_rotate %86 by %c254_i32_50 dim 1 : vector<8x256xf32>, i32 -> vector<8x256xf32>
    %116 = vector.broadcast %49 : vector<1x256xf32> to vector<8x256xf32>
    %117 = arith.mulf %115, %116 : vector<8x256xf32>
    %c4_51 = arith.constant 4 : index
    %c0_52 = arith.constant 0 : index
    %c0_53 = arith.constant 0 : index
    %118 = vector.load %arg4[%c4_51, %c0_52, %c0_53] : memref<5x8x8xf32, #tpu.memory_space<vmem>>, vector<1x8x8xf32>
    %119 = vector.shape_cast %118 : vector<1x8x8xf32> to vector<8x8xf32>
    %cst_54 = arith.constant dense<0.000000e+00> : vector<8x256xf32>
    %120 = tpu.matmul %119, %117, %cst_54 {dimension_numbers = #tpu.dot_dimension_numbers<[1], [0], [0], [1], [0, 0, 1, 1], [], []>} : vector<8x8xf32>, vector<8x256xf32>, vector<8x256xf32> -> vector<8x256xf32>
    %121 = arith.addf %114, %120 : vector<8x256xf32>
    %cst_55 = arith.constant 0.000000e+00 : f32
    %122 = vector.broadcast %cst_55 : f32 to vector<8x256xf32>
    %123 = arith.maximumf %121, %122 : vector<8x256xf32>
    %124 = vector.extract_strided_slice %123 {offsets = [0, 0], sizes = [8, 128], strides = [1, 1]} : vector<8x256xf32> to vector<8x128xf32>
    %c0_56 = arith.constant 0 : index
    %c0_57 = arith.constant 0 : index
    %c0_58 = arith.constant 0 : index
    %125 = vector.load %arg6[%c0_56, %c0_57, %c0_58] : memref<2x8x128xf32, #tpu.memory_space<vmem>>, vector<1x8x128xf32>
    %126 = vector.shape_cast %125 : vector<1x8x128xf32> to vector<8x128xf32>
    %127 = vector.shape_cast %124 : vector<8x128xf32> to vector<1x8x128xf32>
    tpu.vector_store %arg6[%c0_56, %c0_57, %c0_58], %127 {strides = array<i32>} : memref<2x8x128xf32, #tpu.memory_space<vmem>>, vector<1x8x128xf32>,
    %128 = vector.extract_strided_slice %123 {offsets = [0, 128], sizes = [8, 128], strides = [1, 1]} : vector<8x256xf32> to vector<8x128xf32>
    %c1_59 = arith.constant 1 : index
    %c0_60 = arith.constant 0 : index
    %c0_61 = arith.constant 0 : index
    %129 = vector.load %arg6[%c1_59, %c0_60, %c0_61] : memref<2x8x128xf32, #tpu.memory_space<vmem>>, vector<1x8x128xf32>
    %130 = vector.shape_cast %129 : vector<1x8x128xf32> to vector<8x128xf32>
    %131 = vector.shape_cast %128 : vector<8x128xf32> to vector<1x8x128xf32>
    tpu.vector_store %arg6[%c1_59, %c0_60, %c0_61], %131 {strides = array<i32>} : memref<2x8x128xf32, #tpu.memory_space<vmem>>, vector<1x8x128xf32>,
    return
  }
  func.func @transform_0(%arg0: i32) -> (i32, i32, i32) {
    %c0_i32 = arith.constant 0 : i32
    %c0_i32_0 = arith.constant 0 : i32
    %c0_i32_1 = arith.constant 0 : i32
    return %arg0, %c0_i32, %c0_i32_0 : i32, i32, i32
  }
  func.func @transform_1(%arg0: i32) -> (i32, i32, i32) {
    %c0_i32 = arith.constant 0 : i32
    %c0_i32_0 = arith.constant 0 : i32
    %c0_i32_1 = arith.constant 0 : i32
    %c0_i32_2 = arith.constant 0 : i32
    return %c0_i32, %c0_i32_0, %c0_i32_1 : i32, i32, i32
  }
  func.func @transform_2(%arg0: i32) -> (i32, i32) {
    %c0_i32 = arith.constant 0 : i32
    %c0_i32_0 = arith.constant 0 : i32
    %c0_i32_1 = arith.constant 0 : i32
    return %c0_i32, %c0_i32_0 : i32, i32
  }
  func.func @transform_3(%arg0: i32) -> (i32, i32, i32) {
    %c0_i32 = arith.constant 0 : i32
    %c0_i32_0 = arith.constant 0 : i32
    %c0_i32_1 = arith.constant 0 : i32
    %c0_i32_2 = arith.constant 0 : i32
    return %c0_i32, %c0_i32_0, %c0_i32_1 : i32, i32, i32
  }
  func.func @transform_4(%arg0: i32) -> (i32, i32) {
    %c0_i32 = arith.constant 0 : i32
    %c0_i32_0 = arith.constant 0 : i32
    %c0_i32_1 = arith.constant 0 : i32
    return %c0_i32, %c0_i32_0 : i32, i32
  }
  func.func @transform_5(%arg0: i32) -> (i32, i32, i32) {
    %c0_i32 = arith.constant 0 : i32
    %c0_i32_0 = arith.constant 0 : i32
    %c0_i32_1 = arith.constant 0 : i32
    return %arg0, %c0_i32, %c0_i32_0 : i32, i32, i32
  }
}

</mosaic_0001>

<llo_original>
// kernel: tpu_custom_call.1
$region0: #{tpu_custom_call.1}
  #allocation0 [shape = 'u32[]', space=smem, size = 0x4, offset = 0x4, fixed_abs, tag = 'smem constant byte address 0x4 - core index']
  #allocation1 [shape = 'u32[144,128]{1,0:T(1,128)}', space=vmem, size = 0x12000, scoped, tag = 'internal scratch']
  %s0 = inlined_call_operand.vmem [shape: f32[2,4,128], index: 0, kind: input, shape index: {}]
  %s1 = inlined_call_operand.vmem [shape: f32[5,8,4], index: 1, kind: input, shape index: {}]
  %s2 = inlined_call_operand.vmem [shape: f32[8,1], index: 2, kind: input, shape index: {}]
  %s3 = inlined_call_operand.vmem [shape: f32[5,8,8], index: 3, kind: input, shape index: {}]
  %s4 = inlined_call_operand.vmem [shape: f32[8,1], index: 4, kind: input, shape index: {}]
  %s5 = inlined_call_operand.hbm [shape: f32[2,8,128], index: 5, kind: output, shape index: {}]
  %s6 = sld [smem:[#allocation0]]
  $region30: #{tpu_custom_call.1} parent=0
    _
  %s8 = ssub.s32 1, %s6
  %s9 = scalar_select 0, %s8, %s6
  $region1: #{tpu_custom_call.1} parent=0
    #allocation2 [shape = 'u8[8192]{0}', space=vmem, size = 0x2000, scoped, tag = 'output window, operand 0, single buffered']
    #allocation3 [shape = 's32[1]{0}', space=sflag, size = 0x4, scoped, tag = 'scoped memory for tpu_custom_call.1']
    %10 = vsyncpa [#allocation3], 0
    // Predicated region
    $region2: #{tpu_custom_call.1} parent=1 // pred_check
      _
    $region3: #{tpu_custom_call.1} parent=1 // pred_check_branch
      %12 = sbr.rel (0) target = $region5
    $region4: #{tpu_custom_call.1} parent=1 // pred_region
      _
    $region5: #{tpu_custom_call.1} parent=1 // pred_fallthru
      _
    // Predicated region
    $region6: #{tpu_custom_call.1} parent=1 // pred_check
      _
    $region7: #{tpu_custom_call.1} parent=1 // pred_check_branch
      %14 = sbr.rel (0) target = $region9
    $region8: #{tpu_custom_call.1} parent=1 // pred_region
      _
    $region9: #{tpu_custom_call.1} parent=1 // pred_fallthru
      _
    // Predicated region
    $region10: #{tpu_custom_call.1} parent=1 // pred_check
      _
    $region11: #{tpu_custom_call.1} parent=1 // pred_check_branch
      %16 = sbr.rel (0) target = $region13
    $region12: #{tpu_custom_call.1} parent=1 // pred_region
      _
    $region13: #{tpu_custom_call.1} parent=1 // pred_fallthru
      _
    // Predicated region
    $region14: #{tpu_custom_call.1} parent=1 // pred_check
      _
    $region15: #{tpu_custom_call.1} parent=1 // pred_check_branch
      %18 = sbr.rel (0) target = $region17
    $region16: #{tpu_custom_call.1} parent=1 // pred_region
      _
    $region17: #{tpu_custom_call.1} parent=1 // pred_fallthru
      _
    // Predicated region
    $region18: #{tpu_custom_call.1} parent=1 // pred_check
      _
    $region19: #{tpu_custom_call.1} parent=1 // pred_check_branch
      %20 = sbr.rel (0) target = $region21
    $region20: #{tpu_custom_call.1} parent=1 // pred_region
      _
    $region21: #{tpu_custom_call.1} parent=1 // pred_fallthru
      _
    %v21 = vld [vmem:[%s0] sm:$0xf]
    %s22 = scalar_lea.vmem %s0, 4
    %v23 = vld [vmem:[%s22] sm:$0xf]
    %v24 = vlaneseq
    %v25 = vand.u32 %v24, 127
    %v26 = vadd.s32 %v25, 128
    %vm27 = vcmp.lt.s32.totalorder %v25, 0
    %v28 = vsub.s32 0, %v25
    %v29 = vsel %vm27, %v28, %v25
    %v30 = vshrl.u32 %v29, 7
    %v31 = vand.u32 %v29, 127
    %v32 = vsub.s32 0, %v31
    %v33 = vsel %vm27, %v32, %v31
    %vm34 = vcmp.lt.s32.totalorder %v26, 0
    %v35 = vsub.s32 0, %v26
    %v36 = vsel %vm34, %v35, %v26
    %v37 = vshrl.u32 %v36, 7
    %v38 = vand.u32 %v36, 127
    %v39 = vsub.s32 0, %v38
    %v40 = vsel %vm34, %v39, %v38
    %vm41 = vcmp.ne.s32.totalorder %v33, 0
    %vm42 = vcmp.ne.s32.totalorder %v40, 0
    %vm43 = vcmp.lt.s32.totalorder %v33, 0
    %vm44 = vcmp.lt.s32.totalorder %v40, 0
    %vm45 = vmand %vm43, %vm41
    %vm46 = vmand %vm44, %vm42
    %v47 = vadd.s32 %v33, 128
    %v48 = vadd.s32 %v40, 128
    %v49 = vsel %vm45, %v47, %v33
    %v50 = vsel %vm46, %v48, %v40
    %vm51 = vcmp.ge.s32.totalorder %v49, 2
    %vm52 = vcmp.ge.s32.totalorder %v50, 2
    %vm53 = vcmp.lt.s32.totalorder %v49, 130
    %vm54 = vcmp.lt.s32.totalorder %v50, 130
    %vm55 = vmand %vm51, %vm53
    %vm56 = vmand %vm52, %vm54
    %v57 = vsel %vm55, 1, 0
    %v58 = vsel %vm56, 1, 0
    %v59 = vcvt.s32.f32 %v57
    %v60 = vcvt.s32.f32 %v58
    %vm61 = vcmp.ge.s32.totalorder %v49, 1
    %vm62 = vcmp.ge.s32.totalorder %v50, 1
    %vm63 = vcmp.lt.s32.totalorder %v49, 129
    %vm64 = vcmp.lt.s32.totalorder %v50, 129
    %vm65 = vmand %vm61, %vm63
    %vm66 = vmand %vm62, %vm64
    %v67 = vsel %vm65, 1, 0
    %v68 = vsel %vm66, 1, 0
    %v69 = vcvt.s32.f32 %v67
    %v70 = vcvt.s32.f32 %v68
    %vm71 = vcmp.ge.s32.totalorder %v49, 4294967295
    %vm72 = vcmp.ge.s32.totalorder %v50, 4294967295
    %vm73 = vcmp.lt.s32.totalorder %v49, 127
    %vm74 = vcmp.lt.s32.totalorder %v50, 127
    %vm75 = vmand %vm71, %vm73
    %vm76 = vmand %vm72, %vm74
    %v77 = vsel %vm75, 1, 0
    %v78 = vsel %vm76, 1, 0
    %v79 = vcvt.s32.f32 %v77
    %v80 = vcvt.s32.f32 %v78
    %vm81 = vcmp.ge.s32.totalorder %v49, 4294967294
    %vm82 = vcmp.ge.s32.totalorder %v50, 4294967294
    %vm83 = vcmp.lt.s32.totalorder %v49, 126
    %vm84 = vcmp.lt.s32.totalorder %v50, 126
    %vm85 = vmand %vm81, %vm83
    %vm86 = vmand %vm82, %vm84
    %v87 = vsel %vm85, 1, 0
    %v88 = vsel %vm86, 1, 0
    %v89 = vcvt.s32.f32 %v87
    %v90 = vcvt.s32.f32 %v88
    %v91 = vld [vmem:[%s2] sm:$0xff]
    %93 = vset.pattern.permute.xlu0 0
    %94 = vperm.xlu0 %93, %v91
    %v95 = vpop.permute.xlu0 %94
    %97 = vrot.lane.b32.xlu0 %v21, 2
    %v98 = vpop.permute.xlu0 %97
    %99 = vrot.lane.b32.xlu0 %v23, 2
    %v100 = vpop.permute.xlu0 %99
    %vm101 = vcmp.lt.s32.totalorder %v25, 2
    %v102 = vsel %vm101, %v98, %v100
    %v103 = vsel %vm101, %v100, %v98
    %v104 = vmul.f32 %v103, %v59
    %v105 = vmul.f32 %v102, %v60
    %v106 = vld [vmem:[%s1] sm:$0xff]
    %vm107 = vcmask 31744
    %v109 = vsel %vm107, %v106, 0
    %vm111 = vcmask 1043456
    %v113 = vsel %vm111, %v104, 0
    %v116 = vsel %vm111, %v105, 0
    %118 = vmatprep.subr.mxu0 %v116
    %119 = vmatpush1.msra.mxu0 %v113
    %120 = vmatprep.subr.mxu0 0.0
    %121 = vmatpush1.msra.mxu0 0.0
    %122 = vmatprep.subr.mxu0 0.0
    %123 = vmatpush1.msra.mxu0 0.0
    %124 = vmatprep.subr.mxu0 0.0
    %125 = vmatpush1.msra.mxu0 0.0
    %126 = vmatprep.subr.mxu0 0.0
    %127 = vmatpush1.msra.mxu0 0.0
    %128 = vmatprep.subr.mxu0 0.0
    %129 = vmatpush1.msra.mxu0 0.0
    %130 = vmatprep.subr.mxu0 0.0
    %131 = vmatpush1.msra.mxu0 0.0
    %132 = vmatprep.subr.mxu0 0.0
    %133 = vmatpush1.msra.mxu0 0.0
    %134 = vmatprep.subr.mxu0 0.0
    %135 = vmatpush1.msra.mxu0 0.0
    %136 = vmatprep.subr.mxu0 0.0
    %137 = vmatpush1.msra.mxu0 0.0
    %138 = vmatprep.subr.mxu0 0.0
    %139 = vmatpush1.msra.mxu0 0.0
    %140 = vmatprep.subr.mxu0 0.0
    %141 = vmatpush1.msra.mxu0 0.0
    %142 = vmatprep.subr.mxu0 0.0
    %143 = vmatpush1.msra.mxu0 0.0
    %144 = vmatprep.subr.mxu0 0.0
    %145 = vmatpush1.msra.mxu0 0.0
    %146 = vmatprep.subr.mxu0 0.0
    %147 = vmatpush1.msra.mxu0 0.0
    %148 = vmatprep.subr.mxu0 0.0
    %149 = vmatpush1.msra.mxu0 0.0
    %150 = vmatprep.subr.mxu0 0.0
    %151 = vmatpush1.msra.mxu0 0.0
    %152 = vmatprep.subr.mxu0 0.0
    %153 = vmatpush1.msra.mxu0 0.0
    %154 = vmatprep.subr.mxu0 0.0
    %155 = vmatpush1.msra.mxu0 0.0
    %156 = vmatprep.subr.mxu0 0.0
    %157 = vmatpush1.msra.mxu0 0.0
    %158 = vmatprep.subr.mxu0 0.0
    %159 = vmatpush1.msra.mxu0 0.0
    %160 = vmatprep.subr.mxu0 0.0
    %161 = vmatpush1.msra.mxu0 0.0
    %162 = vmatprep.subr.mxu0 0.0
    %163 = vmatpush1.msra.mxu0 0.0
    %164 = vmatprep.subr.mxu0 0.0
    %165 = vmatpush1.msra.mxu0 0.0
    %166 = vmatprep.subr.mxu0 0.0
    %167 = vmatpush1.msra.mxu0 0.0
    %168 = vmatprep.subr.mxu0 0.0
    %169 = vmatpush1.msra.mxu0 0.0
    %170 = vmatprep.subr.mxu0 0.0
    %171 = vmatpush1.msra.mxu0 0.0
    %172 = vmatprep.subr.mxu0 0.0
    %173 = vmatpush1.msra.mxu0 0.0
    %174 = vmatprep.subr.mxu0 0.0
    %175 = vmatpush1.msra.mxu0 0.0
    %176 = vmatprep.subr.mxu0 0.0
    %177 = vmatpush1.msra.mxu0 0.0
    %178 = vmatprep.subr.mxu0 0.0
    %179 = vmatpush1.msra.mxu0 0.0
    %180 = vmatprep.subr.mxu0 0.0
    %181 = vmatpush1.msra.mxu0 0.0
    %182 = vmatprep.mubr.f32.mxu0 0.0
    %183 = vmatmul.mubr.f32.gmra.mrb[0].mxu0 %v109
    %v184 = vpop.f32.mrb[0].mxu0
    %v185 = vadd.f32 0.0, %v184
    %v186 = vpop.f32.mrb[0].mxu0
    %v187 = vadd.f32 0.0, %v186
    %188 = vdwg.mxu0
    %v189 = vadd.f32 %v95, %v185
    %v190 = vadd.f32 %v95, %v187
    %191 = vrot.lane.b32.xlu0 %v21, 1
    %v192 = vpop.permute.xlu0 %191
    %193 = vrot.lane.b32.xlu0 %v23, 1
    %v194 = vpop.permute.xlu0 %193
    %vm195 = vcmp.lt.s32.totalorder %v25, 1
    %v196 = vsel %vm195, %v192, %v194
    %v197 = vsel %vm195, %v194, %v192
    %v198 = vmul.f32 %v197, %v69
    %v199 = vmul.f32 %v196, %v70
    %s200 = scalar_lea.vmem %s1, 8
    %v201 = vld [vmem:[%s200] sm:$0xff]
    %v203 = vsel %vm107, %v201, 0
    %v206 = vsel %vm111, %v198, 0
    %v209 = vsel %vm111, %v199, 0
    %211 = vmatprep.subr.mxu0 %v209
    %212 = vmatpush1.msra.mxu0 %v206
    %213 = vmatprep.subr.mxu0 0.0
    %214 = vmatpush1.msra.mxu0 0.0
    %215 = vmatprep.subr.mxu0 0.0
    %216 = vmatpush1.msra.mxu0 0.0
    %217 = vmatprep.subr.mxu0 0.0
    %218 = vmatpush1.msra.mxu0 0.0
    %219 = vmatprep.subr.mxu0 0.0
    %220 = vmatpush1.msra.mxu0 0.0
    %221 = vmatprep.subr.mxu0 0.0
    %222 = vmatpush1.msra.mxu0 0.0
    %223 = vmatprep.subr.mxu0 0.0
    %224 = vmatpush1.msra.mxu0 0.0
    %225 = vmatprep.subr.mxu0 0.0
    %226 = vmatpush1.msra.mxu0 0.0
    %227 = vmatprep.subr.mxu0 0.0
    %228 = vmatpush1.msra.mxu0 0.0
    %229 = vmatprep.subr.mxu0 0.0
    %230 = vmatpush1.msra.mxu0 0.0
    %231 = vmatprep.subr.mxu0 0.0
    %232 = vmatpush1.msra.mxu0 0.0
    %233 = vmatprep.subr.mxu0 0.0
    %234 = vmatpush1.msra.mxu0 0.0
    %235 = vmatprep.subr.mxu0 0.0
    %236 = vmatpush1.msra.mxu0 0.0
    %237 = vmatprep.subr.mxu0 0.0
    %238 = vmatpush1.msra.mxu0 0.0
    %239 = vmatprep.subr.mxu0 0.0
    %240 = vmatpush1.msra.mxu0 0.0
    %241 = vmatprep.subr.mxu0 0.0
    %242 = vmatpush1.msra.mxu0 0.0
    %243 = vmatprep.subr.mxu0 0.0
    %244 = vmatpush1.msra.mxu0 0.0
    %245 = vmatprep.subr.mxu0 0.0
    %246 = vmatpush1.msra.mxu0 0.0
    %247 = vmatprep.subr.mxu0 0.0
    %248 = vmatpush1.msra.mxu0 0.0
    %249 = vmatprep.subr.mxu0 0.0
    %250 = vmatpush1.msra.mxu0 0.0
    %251 = vmatprep.subr.mxu0 0.0
    %252 = vmatpush1.msra.mxu0 0.0
    %253 = vmatprep.subr.mxu0 0.0
    %254 = vmatpush1.msra.mxu0 0.0
    %255 = vmatprep.subr.mxu0 0.0
    %256 = vmatpush1.msra.mxu0 0.0
    %257 = vmatprep.subr.mxu0 0.0
    %258 = vmatpush1.msra.mxu0 0.0
    %259 = vmatprep.subr.mxu0 0.0
    %260 = vmatpush1.msra.mxu0 0.0
    %261 = vmatprep.subr.mxu0 0.0
    %262 = vmatpush1.msra.mxu0 0.0
    %263 = vmatprep.subr.mxu0 0.0
    %264 = vmatpush1.msra.mxu0 0.0
    %265 = vmatprep.subr.mxu0 0.0
    %266 = vmatpush1.msra.mxu0 0.0
    %267 = vmatprep.subr.mxu0 0.0
    %268 = vmatpush1.msra.mxu0 0.0
    %269 = vmatprep.subr.mxu0 0.0
    %270 = vmatpush1.msra.mxu0 0.0
    %271 = vmatprep.subr.mxu0 0.0
    %272 = vmatpush1.msra.mxu0 0.0
    %273 = vmatprep.subr.mxu0 0.0
    %274 = vmatpush1.msra.mxu0 0.0
    %275 = vmatprep.mubr.f32.mxu0 0.0
    %276 = vmatmul.mubr.f32.gmra.mrb[0].mxu0 %v203
    %v277 = vpop.f32.mrb[0].mxu0
    %v278 = vadd.f32 0.0, %v277
    %v279 = vpop.f32.mrb[0].mxu0
    %v280 = vadd.f32 0.0, %v279
    %281 = vdwg.mxu0
    %v282 = vadd.f32 %v189, %v278
    %v283 = vadd.f32 %v190, %v280
    %s284 = scalar_lea.vmem %s1, 16
    %v285 = vld [vmem:[%s284] sm:$0xff]
    %v287 = vsel %vm107, %v285, 0
    %v290 = vsel %vm111, %v21, 0
    %v293 = vsel %vm111, %v23, 0
    %295 = vmatprep.subr.mxu0 %v293
    %296 = vmatpush1.msra.mxu0 %v290
    %297 = vmatprep.subr.mxu0 0.0
    %298 = vmatpush1.msra.mxu0 0.0
    %299 = vmatprep.subr.mxu0 0.0
    %300 = vmatpush1.msra.mxu0 0.0
    %301 = vmatprep.subr.mxu0 0.0
    %302 = vmatpush1.msra.mxu0 0.0
    %303 = vmatprep.subr.mxu0 0.0
    %304 = vmatpush1.msra.mxu0 0.0
    %305 = vmatprep.subr.mxu0 0.0
    %306 = vmatpush1.msra.mxu0 0.0
    %307 = vmatprep.subr.mxu0 0.0
    %308 = vmatpush1.msra.mxu0 0.0
    %309 = vmatprep.subr.mxu0 0.0
    %310 = vmatpush1.msra.mxu0 0.0
    %311 = vmatprep.subr.mxu0 0.0
    %312 = vmatpush1.msra.mxu0 0.0
    %313 = vmatprep.subr.mxu0 0.0
    %314 = vmatpush1.msra.mxu0 0.0
    %315 = vmatprep.subr.mxu0 0.0
    %316 = vmatpush1.msra.mxu0 0.0
    %317 = vmatprep.subr.mxu0 0.0
    %318 = vmatpush1.msra.mxu0 0.0
    %319 = vmatprep.subr.mxu0 0.0
    %320 = vmatpush1.msra.mxu0 0.0
    %321 = vmatprep.subr.mxu0 0.0
    %322 = vmatpush1.msra.mxu0 0.0
    %323 = vmatprep.subr.mxu0 0.0
    %324 = vmatpush1.msra.mxu0 0.0
    %325 = vmatprep.subr.mxu0 0.0
    %326 = vmatpush1.msra.mxu0 0.0
    %327 = vmatprep.subr.mxu0 0.0
    %328 = vmatpush1.msra.mxu0 0.0
    %329 = vmatprep.subr.mxu0 0.0
    %330 = vmatpush1.msra.mxu0 0.0
    %331 = vmatprep.subr.mxu0 0.0
    %332 = vmatpush1.msra.mxu0 0.0
    %333 = vmatprep.subr.mxu0 0.0
    %334 = vmatpush1.msra.mxu0 0.0
    %335 = vmatprep.subr.mxu0 0.0
    %336 = vmatpush1.msra.mxu0 0.0
    %337 = vmatprep.subr.mxu0 0.0
    %338 = vmatpush1.msra.mxu0 0.0
    %339 = vmatprep.subr.mxu0 0.0
    %340 = vmatpush1.msra.mxu0 0.0
    %341 = vmatprep.subr.mxu0 0.0
    %342 = vmatpush1.msra.mxu0 0.0
    %343 = vmatprep.subr.mxu0 0.0
    %344 = vmatpush1.msra.mxu0 0.0
    %345 = vmatprep.subr.mxu0 0.0
    %346 = vmatpush1.msra.mxu0 0.0
    %347 = vmatprep.subr.mxu0 0.0
    %348 = vmatpush1.msra.mxu0 0.0
    %349 = vmatprep.subr.mxu0 0.0
    %350 = vmatpush1.msra.mxu0 0.0
    %351 = vmatprep.subr.mxu0 0.0
    %352 = vmatpush1.msra.mxu0 0.0
    %353 = vmatprep.subr.mxu0 0.0
    %354 = vmatpush1.msra.mxu0 0.0
    %355 = vmatprep.subr.mxu0 0.0
    %356 = vmatpush1.msra.mxu0 0.0
    %357 = vmatprep.subr.mxu0 0.0
    %358 = vmatpush1.msra.mxu0 0.0
    %359 = vmatprep.mubr.f32.mxu0 0.0
    %360 = vmatmul.mubr.f32.gmra.mrb[0].mxu0 %v287
    %v361 = vpop.f32.mrb[0].mxu0
    %v362 = vadd.f32 0.0, %v361
    %v363 = vpop.f32.mrb[0].mxu0
    %v364 = vadd.f32 0.0, %v363
    %365 = vdwg.mxu0
    %v366 = vadd.f32 %v282, %v362
    %v367 = vadd.f32 %v283, %v364
    %368 = vrot.lane.b32.xlu0 %v21, 127
    %v369 = vpop.permute.xlu0 %368
    %370 = vrot.lane.b32.xlu0 %v23, 127
    %v371 = vpop.permute.xlu0 %370
    %vm372 = vcmp.lt.s32.totalorder %v25, 127
    %v373 = vsel %vm372, %v369, %v371
    %v374 = vsel %vm372, %v371, %v369
    %v375 = vmul.f32 %v373, %v79
    %v376 = vmul.f32 %v374, %v80
    %s377 = scalar_lea.vmem %s1, 24
    %v378 = vld [vmem:[%s377] sm:$0xff]
    %v380 = vsel %vm107, %v378, 0
    %v383 = vsel %vm111, %v375, 0
    %v386 = vsel %vm111, %v376, 0
    %388 = vmatprep.subr.mxu0 %v386
    %389 = vmatpush1.msra.mxu0 %v383
    %390 = vmatprep.subr.mxu0 0.0
    %391 = vmatpush1.msra.mxu0 0.0
    %392 = vmatprep.subr.mxu0 0.0
    %393 = vmatpush1.msra.mxu0 0.0
    %394 = vmatprep.subr.mxu0 0.0
    %395 = vmatpush1.msra.mxu0 0.0
    %396 = vmatprep.subr.mxu0 0.0
    %397 = vmatpush1.msra.mxu0 0.0
    %398 = vmatprep.subr.mxu0 0.0
    %399 = vmatpush1.msra.mxu0 0.0
    %400 = vmatprep.subr.mxu0 0.0
    %401 = vmatpush1.msra.mxu0 0.0
    %402 = vmatprep.subr.mxu0 0.0
    %403 = vmatpush1.msra.mxu0 0.0
    %404 = vmatprep.subr.mxu0 0.0
    %405 = vmatpush1.msra.mxu0 0.0
    %406 = vmatprep.subr.mxu0 0.0
    %407 = vmatpush1.msra.mxu0 0.0
    %408 = vmatprep.subr.mxu0 0.0
    %409 = vmatpush1.msra.mxu0 0.0
    %410 = vmatprep.subr.mxu0 0.0
    %411 = vmatpush1.msra.mxu0 0.0
    %412 = vmatprep.subr.mxu0 0.0
    %413 = vmatpush1.msra.mxu0 0.0
    %414 = vmatprep.subr.mxu0 0.0
    %415 = vmatpush1.msra.mxu0 0.0
    %416 = vmatprep.subr.mxu0 0.0
    %417 = vmatpush1.msra.mxu0 0.0
    %418 = vmatprep.subr.mxu0 0.0
    %419 = vmatpush1.msra.mxu0 0.0
    %420 = vmatprep.subr.mxu0 0.0
    %421 = vmatpush1.msra.mxu0 0.0
    %422 = vmatprep.subr.mxu0 0.0
    %423 = vmatpush1.msra.mxu0 0.0
    %424 = vmatprep.subr.mxu0 0.0
    %425 = vmatpush1.msra.mxu0 0.0
    %426 = vmatprep.subr.mxu0 0.0
    %427 = vmatpush1.msra.mxu0 0.0
    %428 = vmatprep.subr.mxu0 0.0
    %429 = vmatpush1.msra.mxu0 0.0
    %430 = vmatprep.subr.mxu0 0.0
    %431 = vmatpush1.msra.mxu0 0.0
    %432 = vmatprep.subr.mxu0 0.0
    %433 = vmatpush1.msra.mxu0 0.0
    %434 = vmatprep.subr.mxu0 0.0
    %435 = vmatpush1.msra.mxu0 0.0
    %436 = vmatprep.subr.mxu0 0.0
    %437 = vmatpush1.msra.mxu0 0.0
    %438 = vmatprep.subr.mxu0 0.0
    %439 = vmatpush1.msra.mxu0 0.0
    %440 = vmatprep.subr.mxu0 0.0
    %441 = vmatpush1.msra.mxu0 0.0
    %442 = vmatprep.subr.mxu0 0.0
    %443 = vmatpush1.msra.mxu0 0.0
    %444 = vmatprep.subr.mxu0 0.0
    %445 = vmatpush1.msra.mxu0 0.0
    %446 = vmatprep.subr.mxu0 0.0
    %447 = vmatpush1.msra.mxu0 0.0
    %448 = vmatprep.subr.mxu0 0.0
    %449 = vmatpush1.msra.mxu0 0.0
    %450 = vmatprep.subr.mxu0 0.0
    %451 = vmatpush1.msra.mxu0 0.0
    %452 = vmatprep.mubr.f32.mxu0 0.0
    %453 = vmatmul.mubr.f32.gmra.mrb[0].mxu0 %v380
    %v454 = vpop.f32.mrb[0].mxu0
    %v455 = vadd.f32 0.0, %v454
    %v456 = vpop.f32.mrb[0].mxu0
    %v457 = vadd.f32 0.0, %v456
    %458 = vdwg.mxu0
    %v459 = vadd.f32 %v366, %v455
    %v460 = vadd.f32 %v367, %v457
    %461 = vrot.lane.b32.xlu0 %v21, 126
    %v462 = vpop.permute.xlu0 %461
    %463 = vrot.lane.b32.xlu0 %v23, 126
    %v464 = vpop.permute.xlu0 %463
    %vm465 = vcmp.lt.s32.totalorder %v25, 126
    %v466 = vsel %vm465, %v462, %v464
    %v467 = vsel %vm465, %v464, %v462
    %v468 = vmul.f32 %v466, %v89
    %v469 = vmul.f32 %v467, %v90
    %s470 = scalar_lea.vmem %s1, 32
    %v471 = vld [vmem:[%s470] sm:$0xff]
    %v473 = vsel %vm107, %v471, 0
    %v476 = vsel %vm111, %v468, 0
    %v479 = vsel %vm111, %v469, 0
    %481 = vmatprep.subr.mxu0 %v479
    %482 = vmatpush1.msra.mxu0 %v476
    %483 = vmatprep.subr.mxu0 0.0
    %484 = vmatpush1.msra.mxu0 0.0
    %485 = vmatprep.subr.mxu0 0.0
    %486 = vmatpush1.msra.mxu0 0.0
    %487 = vmatprep.subr.mxu0 0.0
    %488 = vmatpush1.msra.mxu0 0.0
    %489 = vmatprep.subr.mxu0 0.0
    %490 = vmatpush1.msra.mxu0 0.0
    %491 = vmatprep.subr.mxu0 0.0
    %492 = vmatpush1.msra.mxu0 0.0
    %493 = vmatprep.subr.mxu0 0.0
    %494 = vmatpush1.msra.mxu0 0.0
    %495 = vmatprep.subr.mxu0 0.0
    %496 = vmatpush1.msra.mxu0 0.0
    %497 = vmatprep.subr.mxu0 0.0
    %498 = vmatpush1.msra.mxu0 0.0
    %499 = vmatprep.subr.mxu0 0.0
    %500 = vmatpush1.msra.mxu0 0.0
    %501 = vmatprep.subr.mxu0 0.0
    %502 = vmatpush1.msra.mxu0 0.0
    %503 = vmatprep.subr.mxu0 0.0
    %504 = vmatpush1.msra.mxu0 0.0
    %505 = vmatprep.subr.mxu0 0.0
    %506 = vmatpush1.msra.mxu0 0.0
    %507 = vmatprep.subr.mxu0 0.0
    %508 = vmatpush1.msra.mxu0 0.0
    %509 = vmatprep.subr.mxu0 0.0
    %510 = vmatpush1.msra.mxu0 0.0
    %511 = vmatprep.subr.mxu0 0.0
    %512 = vmatpush1.msra.mxu0 0.0
    %513 = vmatprep.subr.mxu0 0.0
    %514 = vmatpush1.msra.mxu0 0.0
    %515 = vmatprep.subr.mxu0 0.0
    %516 = vmatpush1.msra.mxu0 0.0
    %517 = vmatprep.subr.mxu0 0.0
    %518 = vmatpush1.msra.mxu0 0.0
    %519 = vmatprep.subr.mxu0 0.0
    %520 = vmatpush1.msra.mxu0 0.0
    %521 = vmatprep.subr.mxu0 0.0
    %522 = vmatpush1.msra.mxu0 0.0
    %523 = vmatprep.subr.mxu0 0.0
    %524 = vmatpush1.msra.mxu0 0.0
    %525 = vmatprep.subr.mxu0 0.0
    %526 = vmatpush1.msra.mxu0 0.0
    %527 = vmatprep.subr.mxu0 0.0
    %528 = vmatpush1.msra.mxu0 0.0
    %529 = vmatprep.subr.mxu0 0.0
    %530 = vmatpush1.msra.mxu0 0.0
    %531 = vmatprep.subr.mxu0 0.0
    %532 = vmatpush1.msra.mxu0 0.0
    %533 = vmatprep.subr.mxu0 0.0
    %534 = vmatpush1.msra.mxu0 0.0
    %535 = vmatprep.subr.mxu0 0.0
    %536 = vmatpush1.msra.mxu0 0.0
    %537 = vmatprep.subr.mxu0 0.0
    %538 = vmatpush1.msra.mxu0 0.0
    %539 = vmatprep.subr.mxu0 0.0
    %540 = vmatpush1.msra.mxu0 0.0
    %541 = vmatprep.subr.mxu0 0.0
    %542 = vmatpush1.msra.mxu0 0.0
    %543 = vmatprep.subr.mxu0 0.0
    %544 = vmatpush1.msra.mxu0 0.0
    %545 = vmatprep.mubr.f32.mxu0 0.0
    %546 = vmatmul.mubr.f32.gmra.mrb[0].mxu0 %v473
    %v547 = vpop.f32.mrb[0].mxu0
    %v548 = vadd.f32 0.0, %v547
    %v549 = vpop.f32.mrb[0].mxu0
    %v550 = vadd.f32 0.0, %v549
    %551 = vdwg.mxu0
    %v552 = vadd.f32 %v459, %v548
    %v553 = vadd.f32 %v460, %v550
    %v554 = vmax.f32 %v552, 0.0
    %v555 = vmax.f32 %v553, 0.0
    %v556 = vld [vmem:[%s4] sm:$0xff]
    %558 = vset.pattern.permute.xlu0 0
    %559 = vperm.xlu0 %558, %v556
    %v560 = vpop.permute.xlu0 %559
    %562 = vrot.lane.b32.xlu0 %v554, 2
    %v563 = vpop.permute.xlu0 %562
    %564 = vrot.lane.b32.xlu0 %v555, 2
    %v565 = vpop.permute.xlu0 %564
    %v566 = vsel %vm101, %v563, %v565
    %v567 = vsel %vm101, %v565, %v563
    %v568 = vmul.f32 %v567, %v59
    %v569 = vmul.f32 %v566, %v60
    %v570 = vld [vmem:[%s3] sm:$0xff]
    %vm571 = vcmask 64512
    %v573 = vsel %vm571, %v570, 0
    %575 = vmatprep.subr.mxu0 %v569
    %576 = vmatpush1.msra.mxu0 %v568
    %577 = vmatprep.subr.mxu0 0.0
    %578 = vmatpush1.msra.mxu0 0.0
    %579 = vmatprep.subr.mxu0 0.0
    %580 = vmatpush1.msra.mxu0 0.0
    %581 = vmatprep.subr.mxu0 0.0
    %582 = vmatpush1.msra.mxu0 0.0
    %583 = vmatprep.subr.mxu0 0.0
    %584 = vmatpush1.msra.mxu0 0.0
    %585 = vmatprep.subr.mxu0 0.0
    %586 = vmatpush1.msra.mxu0 0.0
    %587 = vmatprep.subr.mxu0 0.0
    %588 = vmatpush1.msra.mxu0 0.0
    %589 = vmatprep.subr.mxu0 0.0
    %590 = vmatpush1.msra.mxu0 0.0
    %591 = vmatprep.subr.mxu0 0.0
    %592 = vmatpush1.msra.mxu0 0.0
    %593 = vmatprep.subr.mxu0 0.0
    %594 = vmatpush1.msra.mxu0 0.0
    %595 = vmatprep.subr.mxu0 0.0
    %596 = vmatpush1.msra.mxu0 0.0
    %597 = vmatprep.subr.mxu0 0.0
    %598 = vmatpush1.msra.mxu0 0.0
    %599 = vmatprep.subr.mxu0 0.0
    %600 = vmatpush1.msra.mxu0 0.0
    %601 = vmatprep.subr.mxu0 0.0
    %602 = vmatpush1.msra.mxu0 0.0
    %603 = vmatprep.subr.mxu0 0.0
    %604 = vmatpush1.msra.mxu0 0.0
    %605 = vmatprep.subr.mxu0 0.0
    %606 = vmatpush1.msra.mxu0 0.0
    %607 = vmatprep.subr.mxu0 0.0
    %608 = vmatpush1.msra.mxu0 0.0
    %609 = vmatprep.subr.mxu0 0.0
    %610 = vmatpush1.msra.mxu0 0.0
    %611 = vmatprep.subr.mxu0 0.0
    %612 = vmatpush1.msra.mxu0 0.0
    %613 = vmatprep.subr.mxu0 0.0
    %614 = vmatpush1.msra.mxu0 0.0
    %615 = vmatprep.subr.mxu0 0.0
    %616 = vmatpush1.msra.mxu0 0.0
    %617 = vmatprep.subr.mxu0 0.0
    %618 = vmatpush1.msra.mxu0 0.0
    %619 = vmatprep.subr.mxu0 0.0
    %620 = vmatpush1.msra.mxu0 0.0
    %621 = vmatprep.subr.mxu0 0.0
    %622 = vmatpush1.msra.mxu0 0.0
    %623 = vmatprep.subr.mxu0 0.0
    %624 = vmatpush1.msra.mxu0 0.0
    %625 = vmatprep.subr.mxu0 0.0
    %626 = vmatpush1.msra.mxu0 0.0
    %627 = vmatprep.subr.mxu0 0.0
    %628 = vmatpush1.msra.mxu0 0.0
    %629 = vmatprep.subr.mxu0 0.0
    %630 = vmatpush1.msra.mxu0 0.0
    %631 = vmatprep.subr.mxu0 0.0
    %632 = vmatpush1.msra.mxu0 0.0
    %633 = vmatprep.subr.mxu0 0.0
    %634 = vmatpush1.msra.mxu0 0.0
    %635 = vmatprep.subr.mxu0 0.0
    %636 = vmatpush1.msra.mxu0 0.0
    %637 = vmatprep.subr.mxu0 0.0
    %638 = vmatpush1.msra.mxu0 0.0
    %639 = vmatprep.mubr.f32.mxu0 0.0
    %640 = vmatmul.mubr.f32.gmra.mrb[0].mxu0 %v573
    %v641 = vpop.f32.mrb[0].mxu0
    %v642 = vadd.f32 0.0, %v641
    %v643 = vpop.f32.mrb[0].mxu0
    %v644 = vadd.f32 0.0, %v643
    %645 = vdwg.mxu0
    %v646 = vadd.f32 %v560, %v642
    %v647 = vadd.f32 %v560, %v644
    %648 = vrot.lane.b32.xlu0 %v554, 1
    %v649 = vpop.permute.xlu0 %648
    %650 = vrot.lane.b32.xlu0 %v555, 1
    %v651 = vpop.permute.xlu0 %650
    %v652 = vsel %vm195, %v649, %v651
    %v653 = vsel %vm195, %v651, %v649
    %v654 = vmul.f32 %v653, %v69
    %v655 = vmul.f32 %v652, %v70
    %s656 = scalar_lea.vmem %s3, 8
    %v657 = vld [vmem:[%s656] sm:$0xff]
    %v659 = vsel %vm571, %v657, 0
    %661 = vmatprep.subr.mxu0 %v655
    %662 = vmatpush1.msra.mxu0 %v654
    %663 = vmatprep.subr.mxu0 0.0
    %664 = vmatpush1.msra.mxu0 0.0
    %665 = vmatprep.subr.mxu0 0.0
    %666 = vmatpush1.msra.mxu0 0.0
    %667 = vmatprep.subr.mxu0 0.0
    %668 = vmatpush1.msra.mxu0 0.0
    %669 = vmatprep.subr.mxu0 0.0
    %670 = vmatpush1.msra.mxu0 0.0
    %671 = vmatprep.subr.mxu0 0.0
    %672 = vmatpush1.msra.mxu0 0.0
    %673 = vmatprep.subr.mxu0 0.0
    %674 = vmatpush1.msra.mxu0 0.0
    %675 = vmatprep.subr.mxu0 0.0
    %676 = vmatpush1.msra.mxu0 0.0
    %677 = vmatprep.subr.mxu0 0.0
    %678 = vmatpush1.msra.mxu0 0.0
    %679 = vmatprep.subr.mxu0 0.0
    %680 = vmatpush1.msra.mxu0 0.0
    %681 = vmatprep.subr.mxu0 0.0
    %682 = vmatpush1.msra.mxu0 0.0
    %683 = vmatprep.subr.mxu0 0.0
    %684 = vmatpush1.msra.mxu0 0.0
    %685 = vmatprep.subr.mxu0 0.0
    %686 = vmatpush1.msra.mxu0 0.0
    %687 = vmatprep.subr.mxu0 0.0
    %688 = vmatpush1.msra.mxu0 0.0
    %689 = vmatprep.subr.mxu0 0.0
    %690 = vmatpush1.msra.mxu0 0.0
    %691 = vmatprep.subr.mxu0 0.0
    %692 = vmatpush1.msra.mxu0 0.0
    %693 = vmatprep.subr.mxu0 0.0
    %694 = vmatpush1.msra.mxu0 0.0
    %695 = vmatprep.subr.mxu0 0.0
    %696 = vmatpush1.msra.mxu0 0.0
    %697 = vmatprep.subr.mxu0 0.0
    %698 = vmatpush1.msra.mxu0 0.0
    %699 = vmatprep.subr.mxu0 0.0
    %700 = vmatpush1.msra.mxu0 0.0
    %701 = vmatprep.subr.mxu0 0.0
    %702 = vmatpush1.msra.mxu0 0.0
    %703 = vmatprep.subr.mxu0 0.0
    %704 = vmatpush1.msra.mxu0 0.0
    %705 = vmatprep.subr.mxu0 0.0
    %706 = vmatpush1.msra.mxu0 0.0
    %707 = vmatprep.subr.mxu0 0.0
    %708 = vmatpush1.msra.mxu0 0.0
    %709 = vmatprep.subr.mxu0 0.0
    %710 = vmatpush1.msra.mxu0 0.0
    %711 = vmatprep.subr.mxu0 0.0
    %712 = vmatpush1.msra.mxu0 0.0
    %713 = vmatprep.subr.mxu0 0.0
    %714 = vmatpush1.msra.mxu0 0.0
    %715 = vmatprep.subr.mxu0 0.0
    %716 = vmatpush1.msra.mxu0 0.0
    %717 = vmatprep.subr.mxu0 0.0
    %718 = vmatpush1.msra.mxu0 0.0
    %719 = vmatprep.subr.mxu0 0.0
    %720 = vmatpush1.msra.mxu0 0.0
    %721 = vmatprep.subr.mxu0 0.0
    %722 = vmatpush1.msra.mxu0 0.0
    %723 = vmatprep.subr.mxu0 0.0
    %724 = vmatpush1.msra.mxu0 0.0
    %725 = vmatprep.mubr.f32.mxu0 0.0
    %726 = vmatmul.mubr.f32.gmra.mrb[0].mxu0 %v659
    %v727 = vpop.f32.mrb[0].mxu0
    %v728 = vadd.f32 0.0, %v727
    %v729 = vpop.f32.mrb[0].mxu0
    %v730 = vadd.f32 0.0, %v729
    %731 = vdwg.mxu0
    %v732 = vadd.f32 %v646, %v728
    %v733 = vadd.f32 %v647, %v730
    %s734 = scalar_lea.vmem %s3, 16
    %v735 = vld [vmem:[%s734] sm:$0xff]
    %v737 = vsel %vm571, %v735, 0
    %739 = vmatprep.subr.mxu0 %v555
    %740 = vmatpush1.msra.mxu0 %v554
    %741 = vmatprep.subr.mxu0 0.0
    %742 = vmatpush1.msra.mxu0 0.0
    %743 = vmatprep.subr.mxu0 0.0
    %744 = vmatpush1.msra.mxu0 0.0
    %745 = vmatprep.subr.mxu0 0.0
    %746 = vmatpush1.msra.mxu0 0.0
    %747 = vmatprep.subr.mxu0 0.0
    %748 = vmatpush1.msra.mxu0 0.0
    %749 = vmatprep.subr.mxu0 0.0
    %750 = vmatpush1.msra.mxu0 0.0
    %751 = vmatprep.subr.mxu0 0.0
    %752 = vmatpush1.msra.mxu0 0.0
    %753 = vmatprep.subr.mxu0 0.0
    %754 = vmatpush1.msra.mxu0 0.0
    %755 = vmatprep.subr.mxu0 0.0
    %756 = vmatpush1.msra.mxu0 0.0
    %757 = vmatprep.subr.mxu0 0.0
    %758 = vmatpush1.msra.mxu0 0.0
    %759 = vmatprep.subr.mxu0 0.0
    %760 = vmatpush1.msra.mxu0 0.0
    %761 = vmatprep.subr.mxu0 0.0
    %762 = vmatpush1.msra.mxu0 0.0
    %763 = vmatprep.subr.mxu0 0.0
    %764 = vmatpush1.msra.mxu0 0.0
    %765 = vmatprep.subr.mxu0 0.0
    %766 = vmatpush1.msra.mxu0 0.0
    %767 = vmatprep.subr.mxu0 0.0
    %768 = vmatpush1.msra.mxu0 0.0
    %769 = vmatprep.subr.mxu0 0.0
    %770 = vmatpush1.msra.mxu0 0.0
    %771 = vmatprep.subr.mxu0 0.0
    %772 = vmatpush1.msra.mxu0 0.0
    %773 = vmatprep.subr.mxu0 0.0
    %774 = vmatpush1.msra.mxu0 0.0
    %775 = vmatprep.subr.mxu0 0.0
    %776 = vmatpush1.msra.mxu0 0.0
    %777 = vmatprep.subr.mxu0 0.0
    %778 = vmatpush1.msra.mxu0 0.0
    %779 = vmatprep.subr.mxu0 0.0
    %780 = vmatpush1.msra.mxu0 0.0
    %781 = vmatprep.subr.mxu0 0.0
    %782 = vmatpush1.msra.mxu0 0.0
    %783 = vmatprep.subr.mxu0 0.0
    %784 = vmatpush1.msra.mxu0 0.0
    %785 = vmatprep.subr.mxu0 0.0
    %786 = vmatpush1.msra.mxu0 0.0
    %787 = vmatprep.subr.mxu0 0.0
    %788 = vmatpush1.msra.mxu0 0.0
    %789 = vmatprep.subr.mxu0 0.0
    %790 = vmatpush1.msra.mxu0 0.0
    %791 = vmatprep.subr.mxu0 0.0
    %792 = vmatpush1.msra.mxu0 0.0
    %793 = vmatprep.subr.mxu0 0.0
    %794 = vmatpush1.msra.mxu0 0.0
    %795 = vmatprep.subr.mxu0 0.0
    %796 = vmatpush1.msra.mxu0 0.0
    %797 = vmatprep.subr.mxu0 0.0
    %798 = vmatpush1.msra.mxu0 0.0
    %799 = vmatprep.subr.mxu0 0.0
    %800 = vmatpush1.msra.mxu0 0.0
    %801 = vmatprep.subr.mxu0 0.0
    %802 = vmatpush1.msra.mxu0 0.0
    %803 = vmatprep.mubr.f32.mxu0 0.0
    %804 = vmatmul.mubr.f32.gmra.mrb[0].mxu0 %v737
    %v805 = vpop.f32.mrb[0].mxu0
    %v806 = vadd.f32 0.0, %v805
    %v807 = vpop.f32.mrb[0].mxu0
    %v808 = vadd.f32 0.0, %v807
    %809 = vdwg.mxu0
    %v810 = vadd.f32 %v732, %v806
    %v811 = vadd.f32 %v733, %v808
    %812 = vrot.lane.b32.xlu0 %v554, 127
    %v813 = vpop.permute.xlu0 %812
    %814 = vrot.lane.b32.xlu0 %v555, 127
    %v815 = vpop.permute.xlu0 %814
    %v816 = vsel %vm372, %v813, %v815
    %v817 = vsel %vm372, %v815, %v813
    %v818 = vmul.f32 %v816, %v79
    %v819 = vmul.f32 %v817, %v80
    %s820 = scalar_lea.vmem %s3, 24
    %v821 = vld [vmem:[%s820] sm:$0xff]
    %v823 = vsel %vm571, %v821, 0
    %825 = vmatprep.subr.mxu0 %v819
    %826 = vmatpush1.msra.mxu0 %v818
    %827 = vmatprep.subr.mxu0 0.0
    %828 = vmatpush1.msra.mxu0 0.0
    %829 = vmatprep.subr.mxu0 0.0
    %830 = vmatpush1.msra.mxu0 0.0
    %831 = vmatprep.subr.mxu0 0.0
    %832 = vmatpush1.msra.mxu0 0.0
    %833 = vmatprep.subr.mxu0 0.0
    %834 = vmatpush1.msra.mxu0 0.0
    %835 = vmatprep.subr.mxu0 0.0
    %836 = vmatpush1.msra.mxu0 0.0
    %837 = vmatprep.subr.mxu0 0.0
    %838 = vmatpush1.msra.mxu0 0.0
    %839 = vmatprep.subr.mxu0 0.0
    %840 = vmatpush1.msra.mxu0 0.0
    %841 = vmatprep.subr.mxu0 0.0
    %842 = vmatpush1.msra.mxu0 0.0
    %843 = vmatprep.subr.mxu0 0.0
    %844 = vmatpush1.msra.mxu0 0.0
    %845 = vmatprep.subr.mxu0 0.0
    %846 = vmatpush1.msra.mxu0 0.0
    %847 = vmatprep.subr.mxu0 0.0
    %848 = vmatpush1.msra.mxu0 0.0
    %849 = vmatprep.subr.mxu0 0.0
    %850 = vmatpush1.msra.mxu0 0.0
    %851 = vmatprep.subr.mxu0 0.0
    %852 = vmatpush1.msra.mxu0 0.0
    %853 = vmatprep.subr.mxu0 0.0
    %854 = vmatpush1.msra.mxu0 0.0
    %855 = vmatprep.subr.mxu0 0.0
    %856 = vmatpush1.msra.mxu0 0.0
    %857 = vmatprep.subr.mxu0 0.0
    %858 = vmatpush1.msra.mxu0 0.0
    %859 = vmatprep.subr.mxu0 0.0
    %860 = vmatpush1.msra.mxu0 0.0
    %861 = vmatprep.subr.mxu0 0.0
    %862 = vmatpush1.msra.mxu0 0.0
    %863 = vmatprep.subr.mxu0 0.0
    %864 = vmatpush1.msra.mxu0 0.0
    %865 = vmatprep.subr.mxu0 0.0
    %866 = vmatpush1.msra.mxu0 0.0
    %867 = vmatprep.subr.mxu0 0.0
    %868 = vmatpush1.msra.mxu0 0.0
    %869 = vmatprep.subr.mxu0 0.0
    %870 = vmatpush1.msra.mxu0 0.0
    %871 = vmatprep.subr.mxu0 0.0
    %872 = vmatpush1.msra.mxu0 0.0
    %873 = vmatprep.subr.mxu0 0.0
    %874 = vmatpush1.msra.mxu0 0.0
    %875 = vmatprep.subr.mxu0 0.0
    %876 = vmatpush1.msra.mxu0 0.0
    %877 = vmatprep.subr.mxu0 0.0
    %878 = vmatpush1.msra.mxu0 0.0
    %879 = vmatprep.subr.mxu0 0.0
    %880 = vmatpush1.msra.mxu0 0.0
    %881 = vmatprep.subr.mxu0 0.0
    %882 = vmatpush1.msra.mxu0 0.0
    %883 = vmatprep.subr.mxu0 0.0
    %884 = vmatpush1.msra.mxu0 0.0
    %885 = vmatprep.subr.mxu0 0.0
    %886 = vmatpush1.msra.mxu0 0.0
    %887 = vmatprep.subr.mxu0 0.0
    %888 = vmatpush1.msra.mxu0 0.0
    %889 = vmatprep.mubr.f32.mxu0 0.0
    %890 = vmatmul.mubr.f32.gmra.mrb[0].mxu0 %v823
    %v891 = vpop.f32.mrb[0].mxu0
    %v892 = vadd.f32 0.0, %v891
    %v893 = vpop.f32.mrb[0].mxu0
    %v894 = vadd.f32 0.0, %v893
    %895 = vdwg.mxu0
    %v896 = vadd.f32 %v810, %v892
    %v897 = vadd.f32 %v811, %v894
    %898 = vrot.lane.b32.xlu0 %v554, 126
    %v899 = vpop.permute.xlu0 %898
    %900 = vrot.lane.b32.xlu0 %v555, 126
    %v901 = vpop.permute.xlu0 %900
    %v902 = vsel %vm465, %v899, %v901
    %v903 = vsel %vm465, %v901, %v899
    %v904 = vmul.f32 %v902, %v89
    %v905 = vmul.f32 %v903, %v90
    %s906 = scalar_lea.vmem %s3, 32
    %v907 = vld [vmem:[%s906] sm:$0xff]
    %v909 = vsel %vm571, %v907, 0
    %911 = vmatprep.subr.mxu0 %v905
    %912 = vmatpush1.msra.mxu0 %v904
    %913 = vmatprep.subr.mxu0 0.0
    %914 = vmatpush1.msra.mxu0 0.0
    %915 = vmatprep.subr.mxu0 0.0
    %916 = vmatpush1.msra.mxu0 0.0
    %917 = vmatprep.subr.mxu0 0.0
    %918 = vmatpush1.msra.mxu0 0.0
    %919 = vmatprep.subr.mxu0 0.0
    %920 = vmatpush1.msra.mxu0 0.0
    %921 = vmatprep.subr.mxu0 0.0
    %922 = vmatpush1.msra.mxu0 0.0
    %923 = vmatprep.subr.mxu0 0.0
    %924 = vmatpush1.msra.mxu0 0.0
    %925 = vmatprep.subr.mxu0 0.0
    %926 = vmatpush1.msra.mxu0 0.0
    %927 = vmatprep.subr.mxu0 0.0
    %928 = vmatpush1.msra.mxu0 0.0
    %929 = vmatprep.subr.mxu0 0.0
    %930 = vmatpush1.msra.mxu0 0.0
    %931 = vmatprep.subr.mxu0 0.0
    %932 = vmatpush1.msra.mxu0 0.0
    %933 = vmatprep.subr.mxu0 0.0
    %934 = vmatpush1.msra.mxu0 0.0
    %935 = vmatprep.subr.mxu0 0.0
    %936 = vmatpush1.msra.mxu0 0.0
    %937 = vmatprep.subr.mxu0 0.0
    %938 = vmatpush1.msra.mxu0 0.0
    %939 = vmatprep.subr.mxu0 0.0
    %940 = vmatpush1.msra.mxu0 0.0
    %941 = vmatprep.subr.mxu0 0.0
    %942 = vmatpush1.msra.mxu0 0.0
    %943 = vmatprep.subr.mxu0 0.0
    %944 = vmatpush1.msra.mxu0 0.0
    %945 = vmatprep.subr.mxu0 0.0
    %946 = vmatpush1.msra.mxu0 0.0
    %947 = vmatprep.subr.mxu0 0.0
    %948 = vmatpush1.msra.mxu0 0.0
    %949 = vmatprep.subr.mxu0 0.0
    %950 = vmatpush1.msra.mxu0 0.0
    %951 = vmatprep.subr.mxu0 0.0
    %952 = vmatpush1.msra.mxu0 0.0
    %953 = vmatprep.subr.mxu0 0.0
    %954 = vmatpush1.msra.mxu0 0.0
    %955 = vmatprep.subr.mxu0 0.0
    %956 = vmatpush1.msra.mxu0 0.0
    %957 = vmatprep.subr.mxu0 0.0
    %958 = vmatpush1.msra.mxu0 0.0
    %959 = vmatprep.subr.mxu0 0.0
    %960 = vmatpush1.msra.mxu0 0.0
    %961 = vmatprep.subr.mxu0 0.0
    %962 = vmatpush1.msra.mxu0 0.0
    %963 = vmatprep.subr.mxu0 0.0
    %964 = vmatpush1.msra.mxu0 0.0
    %965 = vmatprep.subr.mxu0 0.0
    %966 = vmatpush1.msra.mxu0 0.0
    %967 = vmatprep.subr.mxu0 0.0
    %968 = vmatpush1.msra.mxu0 0.0
    %969 = vmatprep.subr.mxu0 0.0
    %970 = vmatpush1.msra.mxu0 0.0
    %971 = vmatprep.subr.mxu0 0.0
    %972 = vmatpush1.msra.mxu0 0.0
    %973 = vmatprep.subr.mxu0 0.0
    %974 = vmatpush1.msra.mxu0 0.0
    %975 = vmatprep.mubr.f32.mxu0 0.0
    %976 = vmatmul.mubr.f32.gmra.mrb[0].mxu0 %v909
    %v977 = vpop.f32.mrb[0].mxu0
    %v978 = vadd.f32 0.0, %v977
    %v979 = vpop.f32.mrb[0].mxu0
    %v980 = vadd.f32 0.0, %v979
    %981 = vdwg.mxu0
    %v982 = vadd.f32 %v896, %v978
    %v983 = vadd.f32 %v897, %v980
    %v984 = vmax.f32 %v982, 0.0
    %v985 = vmax.f32 %v983, 0.0
    %986 = vst [vmem:[#allocation2] sm:$0xff] %v984
    %s987 = scalar_lea.vmem [#allocation2], 8
    %988 = vst [vmem:[%s987] sm:$0xff] %v985
    // Predicated region
    $region22: #{tpu_custom_call.1} parent=1 // pred_check
      _
    $region23: #{tpu_custom_call.1} parent=1 // pred_check_branch
      %990 = sbr.rel (0) target = $region25
    $region24: #{tpu_custom_call.1} parent=1 // pred_region
      %s992 = ssub.s32 256, 256
      %993 = vsyncadd [#allocation3], %s992
      %s994 = sshll.u32 [#allocation2], 4
      %s995 = int_to_ptr.vmem [resolvable:$true] %s994
      %1000 = dma.vmem_to_hbm [thread:$0]  %s995, 256, %s5, [#allocation3], 128, 128, 8
    $region25: #{tpu_custom_call.1} parent=1 // pred_fallthru
      _
    // Predicated region
    $region26: #{tpu_custom_call.1} parent=1 // pred_check
      _
    $region27: #{tpu_custom_call.1} parent=1 // pred_check_branch
      %1002 = sbr.rel (0) target = $region29
    $region28: #{tpu_custom_call.1} parent=1 // pred_region
      %1003 = dma.done [#allocation3], 256
    $region29: #{tpu_custom_call.1} parent=1 // pred_fallthru
      _
    %1004 = vsyncpa [#allocation3], 1

</llo_original>
